<compile_context>
chip_gen: v7x
topology: tpu7x:2x2x1
jax: 0.10.0
libtpu: 0.0.40
codegen_flags: <defaults>
</compile_context>

<pallas_src>
import functools

import jax
import jax.numpy as jnp
from jax.experimental import pallas as pl
from jax.experimental.pallas import tpu as pltpu

_VMEM_BUDGET_BYTES = 40 << 20          # shrink tm if footprint exceeds this
_SUBLANE_BY_ITEMSIZE = {4: 8, 2: 16, 1: 32}


def _round_up(a: int, b: int) -> int:
    return (a + b - 1) // b * b


def _cdiv(a: int, b: int) -> int:
    return (a + b - 1) // b


def _sublane(dtype) -> int:
    return _SUBLANE_BY_ITEMSIZE.get(jnp.dtype(dtype).itemsize, 8)


@functools.lru_cache(maxsize=1)
def _lane_multiple() -> int:
    """MXU-width-aware lane multiple: 256 on v6e/v7x, 128 elsewhere."""
    try:
        kind = jax.devices()[0].device_kind.lower()
    except Exception:
        return 128
    if "v6" in kind or "v7" in kind or "7x" in kind:
        return 256
    return 128


def _pad_feature_dim(d: int, lane: int) -> int:
    # Tiny dims stay at 128 (lane-dense, no extra waste); wide dims round to
    # the generation's MXU width (256 on v6e/v7x) for full-width MXU passes.
    return _round_up(d, 128) if d <= 128 else _round_up(d, lane)


@functools.lru_cache(maxsize=1)
def _resident_pipeline_mode():
    """Single-buffer grid-invariant operands if pipeline_mode is supported.

    Probes once with a tiny kernel; returns None (default double buffering)
    if pl.Buffered / pipeline_mode is unavailable or fails to lower.
    """
    try:
        mode = pl.Buffered(1)

        def _probe(x_ref, o_ref):
            o_ref[...] = x_ref[...] + 1.0

        probe = pl.pallas_call(
            _probe,
            out_shape=jax.ShapeDtypeStruct((8, 128), jnp.float32),
            grid=(1,),
            in_specs=[pl.BlockSpec((8, 128), lambda i: (0, 0),
                                   pipeline_mode=mode)],
            out_specs=pl.BlockSpec((8, 128), lambda i: (0, 0)),
        )
        jax.block_until_ready(probe(jnp.zeros((8, 128), jnp.float32)))
        return mode
    except Exception:
        return None


def _vmem_footprint_bytes(tm, pad_dims, itemsize, weight_buffers):
    """Conservative VMEM estimate for one grid step."""
    n_layers = len(pad_dims) - 1
    weights = sum(pad_dims[i] * pad_dims[i + 1] + pad_dims[i + 1]
                  for i in range(n_layers)) * itemsize * weight_buffers
    io_tiles = 2 * tm * (pad_dims[0] + pad_dims[-1]) * itemsize   # dbl-buffered x/out
    activations = 2 * tm * max(pad_dims) * 4                      # f32 intermediates
    return weights + io_tiles + activations


def _fused_mlp_kernel(*refs, num_layers: int):
    """Fused MLP on one M-tile.

    refs = (x_ref, w0, b0, w1, b1, ..., w_{L-1}, b_{L-1}, o_ref)
      x_ref: (tm, K0)   w_i: (K_i, K_{i+1})   b_i: (1, K_{i+1})   o_ref: (tm, K_L)
    """
    x_ref = refs[0]
    o_ref = refs[-1]

    y = x_ref[...]
    for i in range(num_layers):
        w = refs[1 + 2 * i][...]
        b = refs[2 + 2 * i][...]
        # MXU matmul with f32 accumulation; bias-add / ReLU in f32 on the VPU
        # (safe on v5e which has no bf16 VALU path).
        y = jnp.dot(y, w, preferred_element_type=jnp.float32)
        y = y + b.astype(jnp.float32)
        if i < num_layers - 1:
            y = jnp.maximum(y, 0.0)
            y = y.astype(w.dtype)  # feed the next matmul in native weight dtype
    o_ref[...] = y.astype(o_ref.dtype)


def pad_mlp_params(params, activation_dtype=None):
    """One-time padding of MLP parameters to TPU-friendly shapes.

    `params` is a list of (w, b) with w stored as (in, out) — already the
    transpose of PyTorch's nn.Linear weight — and b of shape (out,).
    The input dim is padded to the dtype sublane multiple (8/16/32) and all
    hidden/output dims to lane-dense multiples (128, or 256 on v6e/v7x when
    the true dim is >= 128).  Call this ONCE outside the jitted hot path and
    reuse the result across calls (hoists the padding ops off the hot path).
    """
    lane = _lane_multiple()
    act_dtype = params[0][0].dtype if activation_dtype is None else activation_dtype
    sub = _sublane(act_dtype)

    dims = [params[0][0].shape[0]] + [w.shape[1] for (w, _) in params]
    pad_dims = [_round_up(dims[0], sub)] + [_pad_feature_dim(d, lane) for d in dims[1:]]

    padded = []
    for i, (w, b) in enumerate(params):
        kin, kout = w.shape
        w_p = jnp.zeros((pad_dims[i], pad_dims[i + 1]), w.dtype).at[:kin, :kout].set(w)
        b_p = jnp.zeros((1, pad_dims[i + 1]), b.dtype).at[0, :kout].set(
            jnp.reshape(b, (-1,)))
        padded.append((w_p, b_p))
    return padded


def mlp_forward(x, padded_params, out_dim, *, tm_max=1024, return_padded=False):
    """MLP.forward (ReLU after every layer except the last), fully fused.

    `padded_params` must come from pad_mlp_params().  `out_dim` is the true
    (unpadded) output width; it must be a static Python int under jit.

    TODO(synk): for many tiny MapTR heads, concatenate their tokens along M
    and make one call here instead of one pallas_call per head.
    """
    num_layers = len(padded_params)
    lead_shape = x.shape[:-1]
    x2d = x.reshape(-1, x.shape[-1])
    M, K = x2d.shape

    pad_dims = [padded_params[0][0].shape[0]] + [w.shape[1] for (w, _) in padded_params]
    assert K <= pad_dims[0], (K, pad_dims[0])
    assert out_dim <= pad_dims[-1], (out_dim, pad_dims[-1])

    itemsize = jnp.dtype(x2d.dtype).itemsize
    sub = _sublane(x2d.dtype)

    resident_mode = _resident_pipeline_mode()
    weight_buffers = 1 if resident_mode is not None else 2

    # --- balanced M tiling; force >= 2 grid steps when there is enough work
    #     so v7x's two TensorCores both get a share of the "parallel" axis.
    n_tiles = max(_cdiv(M, tm_max), 2 if M >= 2 * sub else 1)
    tm = _round_up(_cdiv(M, n_tiles), sub)

    # --- explicit VMEM budget: shrink tm if the footprint would not fit.
    while (_vmem_footprint_bytes(tm, pad_dims, itemsize, weight_buffers)
           > _VMEM_BUDGET_BYTES and tm > sub):
        tm = max(sub, _round_up(tm // 2, sub))

    n_tiles = _cdiv(M, tm)
    m_pad = n_tiles * tm

    footprint = _vmem_footprint_bytes(tm, pad_dims, itemsize, weight_buffers)
    vmem_limit = int(min(max(int(1.5 * footprint), 32 << 20), 48 << 20))

    # --- pad the activation (rows to m_pad, input features to pad_dims[0]).
    #     This is the only per-call padding left; weights are pre-padded.
    if m_pad != M or pad_dims[0] != K:
        x_p = jnp.zeros((m_pad, pad_dims[0]), x2d.dtype).at[:M, :K].set(x2d)
    else:
        x_p = x2d

    def _resident_spec(shape):
        # Constant index_map -> operand never changes across the grid; single
        # buffer it when supported (halves resident-weight VMEM).
        if resident_mode is not None:
            return pl.BlockSpec(shape, lambda i: (0, 0), pipeline_mode=resident_mode)
        return pl.BlockSpec(shape, lambda i: (0, 0))

    in_specs = [pl.BlockSpec((tm, pad_dims[0]), lambda i: (i, 0))]
    flat_inputs = [x_p]
    for (w_p, b_p) in padded_params:
        in_specs.append(_resident_spec(w_p.shape))
        in_specs.append(_resident_spec(b_p.shape))
        flat_inputs += [w_p, b_p]
    out_specs = pl.BlockSpec((tm, pad_dims[-1]), lambda i: (i, 0))

    flops = 2 * m_pad * sum(pad_dims[i] * pad_dims[i + 1] for i in range(num_layers))
    bytes_accessed = (
        x_p.size * itemsize
        + sum(w.size * w.dtype.itemsize + b.size * b.dtype.itemsize
              for w, b in padded_params)
        + m_pad * pad_dims[-1] * itemsize)

    out_p = pl.pallas_call(
        functools.partial(_fused_mlp_kernel, num_layers=num_layers),
        out_shape=jax.ShapeDtypeStruct((m_pad, pad_dims[-1]), x2d.dtype),
        grid_spec=pltpu.PrefetchScalarGridSpec(
            num_scalar_prefetch=0,
            grid=(n_tiles,),
            in_specs=in_specs,
            out_specs=out_specs,
        ),
        compiler_params=pltpu.CompilerParams(
            dimension_semantics=("parallel",),
            vmem_limit_bytes=vmem_limit,
        ),
        cost_estimate=pl.CostEstimate(
            flops=flops, transcendentals=0, bytes_accessed=bytes_accessed),
    )(*flat_inputs)

    if return_padded:
        # Consumers that accept the lane-dense padded (m_pad, K_L_pad) slab
        # can skip the extra HBM pass of the slice below.
        return out_p

    out = out_p[:M, :out_dim]
    return out.reshape(*lead_shape, out_dim)


def init_mlp_params(key, input_dim, hidden_dim, output_dim, num_layers,
                    dtype=jnp.float32):
    """Deterministic init mirroring nn.Linear's default U(-1/sqrt(in), 1/sqrt(in))."""
    h = [hidden_dim] * (num_layers - 1)
    layer_dims = list(zip([input_dim] + h, h + [output_dim]))
    params = []
    for (n_in, n_out) in layer_dims:
        key, kw, kb = jax.random.split(key, 3)
        bound = 1.0 / jnp.sqrt(jnp.array(n_in, dtype))
        # stored as (in, out) — already transposed relative to PyTorch's (out, in)
        w = jax.random.uniform(kw, (n_in, n_out), dtype, -bound, bound)
        b = jax.random.uniform(kb, (n_out,), dtype, -bound, bound)
        params.append((w, b))
    return params


def _reference_mlp(x, params):
    """Pure-JAX reference for correctness checking."""
    num_layers = len(params)
    for i, (w, b) in enumerate(params):
        x = jnp.dot(x, w) + b
        if i < num_layers - 1:
            x = jnp.maximum(x, 0.0)
    return x


if __name__ == "__main__":
    key = jax.random.PRNGKey(0)
    k_x, k_p = jax.random.split(key)

    # Shapes consistent with MapTR usage: MLP(input_dim, hidden, out, 3)
    batch, seq = 2, 8
    input_dim, hidden_dim, output_dim, num_layers = 4, 32, 2, 3

    x = jax.random.normal(k_x, (batch, seq, input_dim), jnp.float32)
    params = init_mlp_params(k_p, input_dim, hidden_dim, output_dim, num_layers)

    # One-time padding, hoisted out of the per-call hot path.
    padded_params = pad_mlp_params(params)

    fwd = jax.jit(functools.partial(mlp_forward, out_dim=output_dim))
    out = jax.block_until_ready(fwd(x, padded_params))

    ref = _reference_mlp(x, params)
    assert out.shape == (batch, seq, output_dim), out.shape
    assert jnp.allclose(out, ref, atol=1e-5, rtol=1e-5), "mismatch vs reference"

    print("KERNEL_OK")
</pallas_src>

<mosaic_0001>
module attributes {stable_mosaic.version = 11 : i64} {
  func.func @_fused_mlp_kernel(%arg0: i32, %arg1: memref<8x8xf32, #tpu.memory_space<vmem>>, %arg2: memref<8x128xf32, #tpu.memory_space<vmem>>, %arg3: memref<1x128xf32, #tpu.memory_space<vmem>>, %arg4: memref<128x128xf32, #tpu.memory_space<vmem>>, %arg5: memref<1x128xf32, #tpu.memory_space<vmem>>, %arg6: memref<128x128xf32, #tpu.memory_space<vmem>>, %arg7: memref<1x128xf32, #tpu.memory_space<vmem>>, %arg8: memref<8x128xf32, #tpu.memory_space<vmem>>) attributes {dimension_semantics = [#tpu.dimension_semantics<parallel>], iteration_bounds = array<i64: 2>, scalar_prefetch = 0 : i64, scratch_operands = 0 : i64, tpu.core_type = #tpu.core_type<tc>, window_params = [{transform_indices = @transform_0, window_bounds = array<i64: 8, 8>}, {pipeline_mode = #tpu.pipeline_mode<synchronous>, transform_indices = @transform_1, window_bounds = array<i64: 8, 128>}, {pipeline_mode = #tpu.pipeline_mode<synchronous>, transform_indices = @transform_2, window_bounds = array<i64: 1, 128>}, {pipeline_mode = #tpu.pipeline_mode<synchronous>, transform_indices = @transform_3, window_bounds = array<i64: 128, 128>}, {pipeline_mode = #tpu.pipeline_mode<synchronous>, transform_indices = @transform_4, window_bounds = array<i64: 1, 128>}, {pipeline_mode = #tpu.pipeline_mode<synchronous>, transform_indices = @transform_5, window_bounds = array<i64: 128, 128>}, {pipeline_mode = #tpu.pipeline_mode<synchronous>, transform_indices = @transform_6, window_bounds = array<i64: 1, 128>}, {transform_indices = @transform_7, window_bounds = array<i64: 8, 128>}]} {
    %c0 = arith.constant 0 : index
    %c0_0 = arith.constant 0 : index
    %0 = vector.load %arg1[%c0, %c0_0] : memref<8x8xf32, #tpu.memory_space<vmem>>, vector<8x8xf32>
    %c0_1 = arith.constant 0 : index
    %c0_2 = arith.constant 0 : index
    %1 = vector.load %arg2[%c0_1, %c0_2] : memref<8x128xf32, #tpu.memory_space<vmem>>, vector<8x128xf32>
    %c0_3 = arith.constant 0 : index
    %c0_4 = arith.constant 0 : index
    %2 = vector.load %arg3[%c0_3, %c0_4] : memref<1x128xf32, #tpu.memory_space<vmem>>, vector<1x128xf32>
    %cst = arith.constant dense<0.000000e+00> : vector<8x128xf32>
    %3 = tpu.matmul %0, %1, %cst {dimension_numbers = #tpu.dot_dimension_numbers<[1], [0], [0], [1], [0, 0, 1, 1], [], []>} : vector<8x8xf32>, vector<8x128xf32>, vector<8x128xf32> -> vector<8x128xf32>
    %4 = vector.broadcast %2 : vector<1x128xf32> to vector<8x128xf32>
    %5 = arith.addf %3, %4 : vector<8x128xf32>
    %cst_5 = arith.constant 0.000000e+00 : f32
    %6 = vector.broadcast %cst_5 : f32 to vector<8x128xf32>
    %7 = arith.maximumf %5, %6 : vector<8x128xf32>
    %c0_6 = arith.constant 0 : index
    %c0_7 = arith.constant 0 : index
    %8 = vector.load %arg4[%c0_6, %c0_7] : memref<128x128xf32, #tpu.memory_space<vmem>>, vector<128x128xf32>
    %c0_8 = arith.constant 0 : index
    %c0_9 = arith.constant 0 : index
    %9 = vector.load %arg5[%c0_8, %c0_9] : memref<1x128xf32, #tpu.memory_space<vmem>>, vector<1x128xf32>
    %cst_10 = arith.constant dense<0.000000e+00> : vector<8x128xf32>
    %10 = tpu.matmul %7, %8, %cst_10 {dimension_numbers = #tpu.dot_dimension_numbers<[1], [0], [0], [1], [0, 0, 1, 1], [], []>} : vector<8x128xf32>, vector<128x128xf32>, vector<8x128xf32> -> vector<8x128xf32>
    %11 = vector.broadcast %9 : vector<1x128xf32> to vector<8x128xf32>
    %12 = arith.addf %10, %11 : vector<8x128xf32>
    %cst_11 = arith.constant 0.000000e+00 : f32
    %13 = vector.broadcast %cst_11 : f32 to vector<8x128xf32>
    %14 = arith.maximumf %12, %13 : vector<8x128xf32>
    %c0_12 = arith.constant 0 : index
    %c0_13 = arith.constant 0 : index
    %15 = vector.load %arg6[%c0_12, %c0_13] : memref<128x128xf32, #tpu.memory_space<vmem>>, vector<128x128xf32>
    %c0_14 = arith.constant 0 : index
    %c0_15 = arith.constant 0 : index
    %16 = vector.load %arg7[%c0_14, %c0_15] : memref<1x128xf32, #tpu.memory_space<vmem>>, vector<1x128xf32>
    %cst_16 = arith.constant dense<0.000000e+00> : vector<8x128xf32>
    %17 = tpu.matmul %14, %15, %cst_16 {dimension_numbers = #tpu.dot_dimension_numbers<[1], [0], [0], [1], [0, 0, 1, 1], [], []>} : vector<8x128xf32>, vector<128x128xf32>, vector<8x128xf32> -> vector<8x128xf32>
    %18 = vector.broadcast %16 : vector<1x128xf32> to vector<8x128xf32>
    %19 = arith.addf %17, %18 : vector<8x128xf32>
    %c0_17 = arith.constant 0 : index
    %c0_18 = arith.constant 0 : index
    %20 = vector.load %arg8[%c0_17, %c0_18] : memref<8x128xf32, #tpu.memory_space<vmem>>, vector<8x128xf32>
    tpu.vector_store %arg8[%c0_17, %c0_18], %19 {strides = array<i32>} : memref<8x128xf32, #tpu.memory_space<vmem>>, vector<8x128xf32>,
    return
  }
  func.func @transform_0(%arg0: i32) -> (i32, i32) {
    %c0_i32 = arith.constant 0 : i32
    %c0_i32_0 = arith.constant 0 : i32
    return %arg0, %c0_i32 : i32, i32
  }
  func.func @transform_1(%arg0: i32) -> (i32, i32) {
    %c0_i32 = arith.constant 0 : i32
    %c0_i32_0 = arith.constant 0 : i32
    %c0_i32_1 = arith.constant 0 : i32
    return %c0_i32, %c0_i32_0 : i32, i32
  }
  func.func @transform_2(%arg0: i32) -> (i32, i32) {
    %c0_i32 = arith.constant 0 : i32
    %c0_i32_0 = arith.constant 0 : i32
    %c0_i32_1 = arith.constant 0 : i32
    return %c0_i32, %c0_i32_0 : i32, i32
  }
  func.func @transform_3(%arg0: i32) -> (i32, i32) {
    %c0_i32 = arith.constant 0 : i32
    %c0_i32_0 = arith.constant 0 : i32
    %c0_i32_1 = arith.constant 0 : i32
    return %c0_i32, %c0_i32_0 : i32, i32
  }
  func.func @transform_4(%arg0: i32) -> (i32, i32) {
    %c0_i32 = arith.constant 0 : i32
    %c0_i32_0 = arith.constant 0 : i32
    %c0_i32_1 = arith.constant 0 : i32
    return %c0_i32, %c0_i32_0 : i32, i32
  }
  func.func @transform_5(%arg0: i32) -> (i32, i32) {
    %c0_i32 = arith.constant 0 : i32
    %c0_i32_0 = arith.constant 0 : i32
    %c0_i32_1 = arith.constant 0 : i32
    return %c0_i32, %c0_i32_0 : i32, i32
  }
  func.func @transform_6(%arg0: i32) -> (i32, i32) {
    %c0_i32 = arith.constant 0 : i32
    %c0_i32_0 = arith.constant 0 : i32
    %c0_i32_1 = arith.constant 0 : i32
    return %c0_i32, %c0_i32_0 : i32, i32
  }
  func.func @transform_7(%arg0: i32) -> (i32, i32) {
    %c0_i32 = arith.constant 0 : i32
    %c0_i32_0 = arith.constant 0 : i32
    return %arg0, %c0_i32 : i32, i32
  }
}

</mosaic_0001>

<llo_original>
// kernel: mlp_forward.1
$region0: #{mlp_forward.1}
  #allocation0 [shape = 'u32[]', space=smem, size = 0x4, offset = 0x4, fixed_abs, tag = 'smem constant byte address 0x4 - core index']
  #allocation1 [shape = 'u32[144,128]{1,0:T(1,128)}', space=vmem, size = 0x12000, scoped, tag = 'internal scratch']
  %s0 = inlined_call_operand.vmem [shape: f32[16,8], index: 0, kind: input, shape index: {}]
  %s1 = inlined_call_operand.vmem [shape: f32[8,128], index: 1, kind: input, shape index: {}]
  %s2 = inlined_call_operand.vmem [shape: f32[1,128], index: 2, kind: input, shape index: {}]
  %s3 = inlined_call_operand.hbm [shape: f32[128,128], index: 3, kind: input, shape index: {}]
  %s4 = inlined_call_operand.vmem [shape: f32[1,128], index: 4, kind: input, shape index: {}]
  %s5 = inlined_call_operand.hbm [shape: f32[128,128], index: 5, kind: input, shape index: {}]
  %s6 = inlined_call_operand.vmem [shape: f32[1,128], index: 6, kind: input, shape index: {}]
  %s7 = inlined_call_operand.vmem [shape: f32[16,128], index: 7, kind: output, shape index: {}]
  %s8 = sld [smem:[#allocation0]]
  $region69: #{mlp_forward.1} parent=0
    _
  %s10 = ssub.s32 1, %s8
  %s11 = scalar_select 0, %s10, %s8
  $region1: #{mlp_forward.1} parent=0
    #allocation2 [shape = 'u8[65536]{0}', space=vmem, size = 0x10000, scoped, tag = 'input window, operand 3, single buffered']
    #allocation3 [shape = 's32[2]{0}', space=sflag, size = 0x8, scoped, tag = 'scoped memory for mlp_forward.1']
    #allocation4 [shape = 'u8[65536]{0}', space=vmem, size = 0x10000, scoped, tag = 'input window, operand 5, single buffered']
    #allocation5 [shape = 's32[1]{0}', space=sflag, size = 0x4, scoped, tag = 'scoped memory for mlp_forward.1']
    %12 = vsyncpa [#allocation3], 0
    %13 = vsyncpa [#allocation5], 0
    loop: start=0, step=1, limit=4
    $region2: #{mlp_forward.1} parent=1 // loop_pre_header
      _
    $region3: #{mlp_forward.1} parent=1 // loop_header
      %s15 = sphi 0, %s19
      %p16 = scmp.ge.s32.totalorder %s15, 4
      %s25 = sphi 0, %s27
      %s28 = sphi 0, %s25
      %s29 = sphi 0, %s28
      %s45 = sphi 0, %s29
      %s49 = sphi 0, %s49
      %s51 = sphi 0, %s49
      %s52 = sphi 0, %s51
      %s66 = sphi 0, %s52
      %s70 = sphi 0, %s70
      %s72 = sphi 0, %s70
      %s73 = sphi 0, %s72
      %s87 = sphi 0, %s73
      %s91 = sphi 0, %s91
      %s93 = sphi 0, %s91
      %s94 = sphi 0, %s93
      %s108 = sphi 0, %s94
      %s112 = sphi 0, %s112
      %s114 = sphi 0, %s112
      %s115 = sphi 0, %s114
      %s129 = sphi 0, %s115
      %s133 = sphi 0, %s133
      %s135 = sphi 0, %s133
      %s136 = sphi 0, %s135
      %s150 = sphi 0, %s136
      %s154 = sphi 0, %s154
      %s156 = sphi 0, %s154
      %s157 = sphi 0, %s156
      %s171 = sphi 0, %s157
      %s177 = sphi 0, %s179
      %s180 = sphi 0, %s177
      %s181 = sphi 0, %s180
      %s197 = sphi 0, %s181
    $region4: #{mlp_forward.1} parent=1 // loop_header_branch
      %18 = sbr.rel (%p16) target = $region8
    $region5: #{mlp_forward.1} parent=1 // loop_body
      %s20 = ssub.s32 %s15, 1
      %s21 = ssub.s32 %s15, 2
      %s22 = sadd.s32 %s15, 1
      %s23 = ssub.s32 %s15, %s22
      %p24 = scmp.eq.s32.totalorder %s23, 0
      %s26 = sadd.s32 %s25, 1
      %s27 = scalar_select %p24, %s25, %s26
      %p30 = pneg %p24
      %p31 = scmp.eq.s32.totalorder %s15, 1
      %p32 = por %p30, %p31
      %p33 = scmp.ne.s32.totalorder %s25, %s28
      %p34 = scmp.eq.s32.totalorder %s15, 0
      %p35 = por %p33, %p34
      %p36 = scmp.ne.s32.totalorder %s25, %s28
      %p37 = scmp.eq.s32.totalorder %s20, 1
      %p38 = por %p36, %p37
      %p39 = scmp.ne.s32.totalorder %s28, %s29
      %p40 = scmp.eq.s32.totalorder %s20, 0
      %p41 = por %p39, %p40
      %p42 = scmp.ne.s32.totalorder %s28, %s29
      %p43 = scmp.eq.s32.totalorder %s21, 1
      %p44 = por %p42, %p43
      %p46 = scmp.ne.s32.totalorder %s29, %s45
      %p47 = scmp.eq.s32.totalorder %s21, 0
      %p48 = por %p46, %p47
      %s50 = sadd.s32 %s49, 1
      %p53 = scmp.eq.s32.totalorder %s15, 1
      %p54 = scmp.ne.s32.totalorder %s49, %s51
      %p55 = scmp.eq.s32.totalorder %s15, 0
      %p56 = por %p54, %p55
      %p57 = scmp.ne.s32.totalorder %s49, %s51
      %p58 = scmp.eq.s32.totalorder %s20, 1
      %p59 = por %p57, %p58
      %p60 = scmp.ne.s32.totalorder %s51, %s52
      %p61 = scmp.eq.s32.totalorder %s20, 0
      %p62 = por %p60, %p61
      %p63 = scmp.ne.s32.totalorder %s51, %s52
      %p64 = scmp.eq.s32.totalorder %s21, 1
      %p65 = por %p63, %p64
      %p67 = scmp.ne.s32.totalorder %s52, %s66
      %p68 = scmp.eq.s32.totalorder %s21, 0
      %p69 = por %p67, %p68
      %s71 = sadd.s32 %s70, 1
      %p74 = scmp.eq.s32.totalorder %s15, 1
      %p75 = scmp.ne.s32.totalorder %s70, %s72
      %p76 = scmp.eq.s32.totalorder %s15, 0
      %p77 = por %p75, %p76
      %p78 = scmp.ne.s32.totalorder %s70, %s72
      %p79 = scmp.eq.s32.totalorder %s20, 1
      %p80 = por %p78, %p79
      %p81 = scmp.ne.s32.totalorder %s72, %s73
      %p82 = scmp.eq.s32.totalorder %s20, 0
      %p83 = por %p81, %p82
      %p84 = scmp.ne.s32.totalorder %s72, %s73
      %p85 = scmp.eq.s32.totalorder %s21, 1
      %p86 = por %p84, %p85
      %p88 = scmp.ne.s32.totalorder %s73, %s87
      %p89 = scmp.eq.s32.totalorder %s21, 0
      %p90 = por %p88, %p89
      %s92 = sadd.s32 %s91, 1
      %p95 = scmp.eq.s32.totalorder %s15, 1
      %p96 = scmp.ne.s32.totalorder %s91, %s93
      %p97 = scmp.eq.s32.totalorder %s15, 0
      %p98 = por %p96, %p97
      %p99 = scmp.ne.s32.totalorder %s91, %s93
      %p100 = scmp.eq.s32.totalorder %s20, 1
      %p101 = por %p99, %p100
      %p102 = scmp.ne.s32.totalorder %s93, %s94
      %p103 = scmp.eq.s32.totalorder %s20, 0
      %p104 = por %p102, %p103
      %p105 = scmp.ne.s32.totalorder %s93, %s94
      %p106 = scmp.eq.s32.totalorder %s21, 1
      %p107 = por %p105, %p106
      %p109 = scmp.ne.s32.totalorder %s94, %s108
      %p110 = scmp.eq.s32.totalorder %s21, 0
      %p111 = por %p109, %p110
      %s113 = sadd.s32 %s112, 1
      %p116 = scmp.eq.s32.totalorder %s15, 1
      %p117 = scmp.ne.s32.totalorder %s112, %s114
      %p118 = scmp.eq.s32.totalorder %s15, 0
      %p119 = por %p117, %p118
      %p120 = scmp.ne.s32.totalorder %s112, %s114
      %p121 = scmp.eq.s32.totalorder %s20, 1
      %p122 = por %p120, %p121
      %p123 = scmp.ne.s32.totalorder %s114, %s115
      %p124 = scmp.eq.s32.totalorder %s20, 0
      %p125 = por %p123, %p124
      %p126 = scmp.ne.s32.totalorder %s114, %s115
      %p127 = scmp.eq.s32.totalorder %s21, 1
      %p128 = por %p126, %p127
      %p130 = scmp.ne.s32.totalorder %s115, %s129
      %p131 = scmp.eq.s32.totalorder %s21, 0
      %p132 = por %p130, %p131
      %s134 = sadd.s32 %s133, 1
      %p137 = scmp.eq.s32.totalorder %s15, 1
      %p138 = scmp.ne.s32.totalorder %s133, %s135
      %p139 = scmp.eq.s32.totalorder %s15, 0
      %p140 = por %p138, %p139
      %p141 = scmp.ne.s32.totalorder %s133, %s135
      %p142 = scmp.eq.s32.totalorder %s20, 1
      %p143 = por %p141, %p142
      %p144 = scmp.ne.s32.totalorder %s135, %s136
      %p145 = scmp.eq.s32.totalorder %s20, 0
      %p146 = por %p144, %p145
      %p147 = scmp.ne.s32.totalorder %s135, %s136
      %p148 = scmp.eq.s32.totalorder %s21, 1
      %p149 = por %p147, %p148
      %p151 = scmp.ne.s32.totalorder %s136, %s150
      %p152 = scmp.eq.s32.totalorder %s21, 0
      %p153 = por %p151, %p152
      %s155 = sadd.s32 %s154, 1
      %p158 = scmp.eq.s32.totalorder %s15, 1
      %p159 = scmp.ne.s32.totalorder %s154, %s156
      %p160 = scmp.eq.s32.totalorder %s15, 0
      %p161 = por %p159, %p160
      %p162 = scmp.ne.s32.totalorder %s154, %s156
      %p163 = scmp.eq.s32.totalorder %s20, 1
      %p164 = por %p162, %p163
      %p165 = scmp.ne.s32.totalorder %s156, %s157
      %p166 = scmp.eq.s32.totalorder %s20, 0
      %p167 = por %p165, %p166
      %p168 = scmp.ne.s32.totalorder %s156, %s157
      %p169 = scmp.eq.s32.totalorder %s21, 1
      %p170 = por %p168, %p169
      %p172 = scmp.ne.s32.totalorder %s157, %s171
      %p173 = scmp.eq.s32.totalorder %s21, 0
      %p174 = por %p172, %p173
      %s175 = ssub.s32 %s15, %s22
      %p176 = scmp.eq.s32.totalorder %s175, 0
      %s178 = sadd.s32 %s177, 1
      %s179 = scalar_select %p176, %s177, %s178
      %p182 = pneg %p176
      %p183 = scmp.eq.s32.totalorder %s15, 1
      %p184 = por %p182, %p183
      %p185 = scmp.ne.s32.totalorder %s177, %s180
      %p186 = scmp.eq.s32.totalorder %s15, 0
      %p187 = por %p185, %p186
      %p188 = scmp.ne.s32.totalorder %s177, %s180
      %p189 = scmp.eq.s32.totalorder %s20, 1
      %p190 = por %p188, %p189
      %p191 = scmp.ne.s32.totalorder %s180, %s181
      %p192 = scmp.eq.s32.totalorder %s20, 0
      %p193 = por %p191, %p192
      %p194 = scmp.ne.s32.totalorder %s180, %s181
      %p195 = scmp.eq.s32.totalorder %s21, 1
      %p196 = por %p194, %p195
      %p198 = scmp.ne.s32.totalorder %s181, %s197
      %p199 = scmp.eq.s32.totalorder %s21, 0
      %p200 = por %p198, %p199
      %p201 = scmp.le.s32.totalorder 1, %s15
      %p202 = scmp.lt.s32.totalorder %s15, 3
      %p203 = pnand %p201, %p202
      %p204 = pneg %p203
      // Predicated region
      $region9: #{mlp_forward.1} parent=5 // pred_check
        _
      $region10: #{mlp_forward.1} parent=5 // pred_check_branch
        %206 = sbr.rel (%p203) target = $region12
      $region11: #{mlp_forward.1} parent=5 // pred_region
        %s207 = ssub.s32 %s15, 1
        // Predicated region
        $region13: #{mlp_forward.1} parent=11 // pred_check
          %p208 = pneg %p62
        $region14: #{mlp_forward.1} parent=11 // pred_check_branch
          %210 = sbr.rel (%p208) target = $region16
        $region15: #{mlp_forward.1} parent=11 // pred_region
          _
        $region16: #{mlp_forward.1} parent=11 // pred_fallthru
          _
        // Predicated region
        $region17: #{mlp_forward.1} parent=11 // pred_check
          %p211 = pneg %p83
        $region18: #{mlp_forward.1} parent=11 // pred_check_branch
          %213 = sbr.rel (%p211) target = $region20
        $region19: #{mlp_forward.1} parent=11 // pred_region
          _
        $region20: #{mlp_forward.1} parent=11 // pred_fallthru
          _
        // Predicated region
        $region21: #{mlp_forward.1} parent=11 // pred_check
          %p214 = pneg %p104
        $region22: #{mlp_forward.1} parent=11 // pred_check_branch
          %216 = sbr.rel (%p214) target = $region24
        $region23: #{mlp_forward.1} parent=11 // pred_region
          %s218 = ssub.s32 2048, 2048
          %219 = vsyncadd [#allocation3], %s218
          %s220 = sshll.u32 [#allocation2], 4
          %s221 = int_to_ptr.vmem [resolvable:$true] %s220
          %226 = dma.hbm_to_vmem [thread:$0]  %s3, 2048, %s221, [#allocation3], 128, 128, 8
        $region24: #{mlp_forward.1} parent=11 // pred_fallthru
          _
        // Predicated region
        $region25: #{mlp_forward.1} parent=11 // pred_check
          %p227 = pneg %p125
        $region26: #{mlp_forward.1} parent=11 // pred_check_branch
          %229 = sbr.rel (%p227) target = $region28
        $region27: #{mlp_forward.1} parent=11 // pred_region
          _
        $region28: #{mlp_forward.1} parent=11 // pred_fallthru
          _
        // Predicated region
        $region29: #{mlp_forward.1} parent=11 // pred_check
          %p230 = pneg %p146
        $region30: #{mlp_forward.1} parent=11 // pred_check_branch
          %232 = sbr.rel (%p230) target = $region32
        $region31: #{mlp_forward.1} parent=11 // pred_region
          %s234 = ssub.s32 2048, 2048
          %235 = vsyncadd [#allocation5], %s234
          %s236 = sshll.u32 [#allocation4], 4
          %s237 = int_to_ptr.vmem [resolvable:$true] %s236
          %242 = dma.hbm_to_vmem [thread:$0]  %s5, 2048, %s237, [#allocation5], 128, 128, 8
        $region32: #{mlp_forward.1} parent=11 // pred_fallthru
          _
        // Predicated region
        $region33: #{mlp_forward.1} parent=11 // pred_check
          %p243 = pneg %p167
        $region34: #{mlp_forward.1} parent=11 // pred_check_branch
          %245 = sbr.rel (%p243) target = $region36
        $region35: #{mlp_forward.1} parent=11 // pred_region
          _
        $region36: #{mlp_forward.1} parent=11 // pred_fallthru
          _
      $region12: #{mlp_forward.1} parent=5 // pred_fallthru
        _
      %p246 = scmp.lt.s32.totalorder %s15, 2
      // Predicated region
      $region37: #{mlp_forward.1} parent=5 // pred_check
        %p247 = pneg %p246
      $region38: #{mlp_forward.1} parent=5 // pred_check_branch
        %249 = sbr.rel (%p247) target = $region40
      $region39: #{mlp_forward.1} parent=5 // pred_region
        // Predicated region
        $region41: #{mlp_forward.1} parent=39 // pred_check
          %p250 = pneg %p35
        $region42: #{mlp_forward.1} parent=39 // pred_check_branch
          %252 = sbr.rel (%p250) target = $region44
        $region43: #{mlp_forward.1} parent=39 // pred_region
          %p253 = scmp.lt.s32.totalorder %s15, 1
          %s254 = scalar_select %p253, %s15, 1
          %s255 = smul.addr %s254, 8
          %s256 = scalar_lea.vmem %s0, %s255
        $region44: #{mlp_forward.1} parent=39 // pred_fallthru
          _
      $region40: #{mlp_forward.1} parent=5 // pred_fallthru
        _
      %p257 = scmp.le.s32.totalorder 1, %s15
      %p258 = scmp.lt.s32.totalorder %s15, 3
      %p259 = pnand %p257, %p258
      %p260 = pneg %p259
      // Predicated region
      $region45: #{mlp_forward.1} parent=5 // pred_check
        _
      $region46: #{mlp_forward.1} parent=5 // pred_check_branch
        %262 = sbr.rel (%p259) target = $region48
      $region47: #{mlp_forward.1} parent=5 // pred_region
        %s263 = ssub.s32 %s15, 1
        // Predicated region
        $region49: #{mlp_forward.1} parent=47 // pred_check
          %p264 = pneg %p104
        $region50: #{mlp_forward.1} parent=47 // pred_check_branch
          %266 = sbr.rel (%p264) target = $region52
        $region51: #{mlp_forward.1} parent=47 // pred_region
          %267 = dma.done [#allocation3], 2048
        $region52: #{mlp_forward.1} parent=47 // pred_fallthru
          _
        // Predicated region
        $region53: #{mlp_forward.1} parent=47 // pred_check
          %p268 = pneg %p146
        $region54: #{mlp_forward.1} parent=47 // pred_check_branch
          %270 = sbr.rel (%p268) target = $region56
        $region55: #{mlp_forward.1} parent=47 // pred_region
          %271 = dma.done [#allocation5], 2048
        $region56: #{mlp_forward.1} parent=47 // pred_fallthru
          _
        %p272 = scmp.lt.s32.totalorder %s20, 1
        %s273 = scalar_select %p272, %s20, 1
        %s274 = smul.addr %s273, 8
        %s275 = scalar_lea.vmem %s0, %s274
        %p276 = pneg %p41
        %p277 = pneg %p38
        %p278 = pneg %p62
        %p279 = pneg %p59
        %p280 = pneg %p83
        %p281 = pneg %p80
        %p282 = pneg %p104
        %p283 = pneg %p101
        %p284 = pneg %p125
        %p285 = pneg %p122
        %p286 = pneg %p146
        %p287 = pneg %p143
        %p288 = pneg %p167
        %p289 = pneg %p164
        %p290 = pneg %p193
        %p291 = pneg %p190
        %p292 = scmp.lt.s32.totalorder %s20, 1
        %s293 = scalar_select %p292, %s20, 1
        %s294 = smul.addr %s293, 8
        %s295 = scalar_lea.vmem %s7, %s294
        %p296 = scmp.lt.s32.totalorder %s20, 1
        %s297 = scalar_select %p296, %s20, 1
        %s298 = smul.addr %s297, 8
        %s299 = scalar_lea.vmem %s0, %s298
        %p300 = scmp.lt.s32.totalorder %s20, 1
        %s301 = scalar_select %p300, %s20, 1
        %s302 = smul.addr %s301, 8
        %s303 = scalar_lea.vmem %s7, %s302
        %v304 = vld [vmem:[%s299] sm:$0xff]
        %v305 = vld [vmem:[%s1] sm:$0xff]
        %v306 = vld [vmem:[%s2] sm:$0x1]
        %v308 = vlaneseq
        %v309 = vshrl.u32 %v308, 7
        %v310 = vsub.s32 0, %v309
        %v311 = vrot.slane %v306, %v310
        %vm313 = vcmask 64512
        %v315 = vsel %vm313, %v304, 0
        %317 = vmatprep.subr.mxu0 0.0
        %318 = vmatpush1.msra.mxu0 %v305
        %319 = vmatprep.subr.mxu0 0.0
        %320 = vmatpush1.msra.mxu0 0.0
        %321 = vmatprep.subr.mxu0 0.0
        %322 = vmatpush1.msra.mxu0 0.0
        %323 = vmatprep.subr.mxu0 0.0
        %324 = vmatpush1.msra.mxu0 0.0
        %325 = vmatprep.subr.mxu0 0.0
        %326 = vmatpush1.msra.mxu0 0.0
        %327 = vmatprep.subr.mxu0 0.0
        %328 = vmatpush1.msra.mxu0 0.0
        %329 = vmatprep.subr.mxu0 0.0
        %330 = vmatpush1.msra.mxu0 0.0
        %331 = vmatprep.subr.mxu0 0.0
        %332 = vmatpush1.msra.mxu0 0.0
        %333 = vmatprep.subr.mxu0 0.0
        %334 = vmatpush1.msra.mxu0 0.0
        %335 = vmatprep.subr.mxu0 0.0
        %336 = vmatpush1.msra.mxu0 0.0
        %337 = vmatprep.subr.mxu0 0.0
        %338 = vmatpush1.msra.mxu0 0.0
        %339 = vmatprep.subr.mxu0 0.0
        %340 = vmatpush1.msra.mxu0 0.0
        %341 = vmatprep.subr.mxu0 0.0
        %342 = vmatpush1.msra.mxu0 0.0
        %343 = vmatprep.subr.mxu0 0.0
        %344 = vmatpush1.msra.mxu0 0.0
        %345 = vmatprep.subr.mxu0 0.0
        %346 = vmatpush1.msra.mxu0 0.0
        %347 = vmatprep.subr.mxu0 0.0
        %348 = vmatpush1.msra.mxu0 0.0
        %349 = vmatprep.subr.mxu0 0.0
        %350 = vmatpush1.msra.mxu0 0.0
        %351 = vmatprep.subr.mxu0 0.0
        %352 = vmatpush1.msra.mxu0 0.0
        %353 = vmatprep.subr.mxu0 0.0
        %354 = vmatpush1.msra.mxu0 0.0
        %355 = vmatprep.subr.mxu0 0.0
        %356 = vmatpush1.msra.mxu0 0.0
        %357 = vmatprep.subr.mxu0 0.0
        %358 = vmatpush1.msra.mxu0 0.0
        %359 = vmatprep.subr.mxu0 0.0
        %360 = vmatpush1.msra.mxu0 0.0
        %361 = vmatprep.subr.mxu0 0.0
        %362 = vmatpush1.msra.mxu0 0.0
        %363 = vmatprep.subr.mxu0 0.0
        %364 = vmatpush1.msra.mxu0 0.0
        %365 = vmatprep.subr.mxu0 0.0
        %366 = vmatpush1.msra.mxu0 0.0
        %367 = vmatprep.subr.mxu0 0.0
        %368 = vmatpush1.msra.mxu0 0.0
        %369 = vmatprep.subr.mxu0 0.0
        %370 = vmatpush1.msra.mxu0 0.0
        %371 = vmatprep.subr.mxu0 0.0
        %372 = vmatpush1.msra.mxu0 0.0
        %373 = vmatprep.subr.mxu0 0.0
        %374 = vmatpush1.msra.mxu0 0.0
        %375 = vmatprep.subr.mxu0 0.0
        %376 = vmatpush1.msra.mxu0 0.0
        %377 = vmatprep.subr.mxu0 0.0
        %378 = vmatpush1.msra.mxu0 0.0
        %379 = vmatprep.subr.mxu0 0.0
        %380 = vmatpush1.msra.mxu0 0.0
        %381 = vmatprep.mubr.f32.mxu0 0.0
        %382 = vmatmul.mubr.f32.gmra.mrb[0].mxu0 %v315
        %v383 = vpop.f32.mrb[0].mxu0
        %v384 = vadd.f32 %v311, %v383
        %v385 = vpop.f32.mrb[0].mxu0
        %386 = vdwg.mxu0
        %v387 = vmax.f32 %v384, 0.0
        %v388 = vld [vmem:[#allocation2] sm:$0xff]
        %v389 = vld [vmem:[#allocation2 + $0x8] sm:$0xff]
        %v390 = vld [vmem:[#allocation2 + $0x10] sm:$0xff]
        %v391 = vld [vmem:[#allocation2 + $0x18] sm:$0xff]
        %v392 = vld [vmem:[#allocation2 + $0x20] sm:$0xff]
        %v393 = vld [vmem:[#allocation2 + $0x28] sm:$0xff]
        %v394 = vld [vmem:[#allocation2 + $0x30] sm:$0xff]
        %v395 = vld [vmem:[#allocation2 + $0x38] sm:$0xff]
        %v396 = vld [vmem:[#allocation2 + $0x40] sm:$0xff]
        %v397 = vld [vmem:[#allocation2 + $0x48] sm:$0xff]
        %v398 = vld [vmem:[#allocation2 + $0x50] sm:$0xff]
        %v399 = vld [vmem:[#allocation2 + $0x58] sm:$0xff]
        %v400 = vld [vmem:[#allocation2 + $0x60] sm:$0xff]
        %v401 = vld [vmem:[#allocation2 + $0x68] sm:$0xff]
        %v402 = vld [vmem:[#allocation2 + $0x70] sm:$0xff]
        %v403 = vld [vmem:[#allocation2 + $0x78] sm:$0xff]
        %v404 = vld [vmem:[%s4] sm:$0x1]
        %v406 = vlaneseq
        %v407 = vshrl.u32 %v406, 7
        %v408 = vsub.s32 0, %v407
        %v409 = vrot.slane %v404, %v408
        %411 = vmatprep.subr.mxu0 0.0
        %412 = vmatpush1.msra.mxu0 %v388
        %413 = vmatprep.subr.mxu0 0.0
        %414 = vmatpush1.msra.mxu0 %v389
        %415 = vmatprep.subr.mxu0 0.0
        %416 = vmatpush1.msra.mxu0 %v390
        %417 = vmatprep.subr.mxu0 0.0
        %418 = vmatpush1.msra.mxu0 %v391
        %419 = vmatprep.subr.mxu0 0.0
        %420 = vmatpush1.msra.mxu0 %v392
        %421 = vmatprep.subr.mxu0 0.0
        %422 = vmatpush1.msra.mxu0 %v393
        %423 = vmatprep.subr.mxu0 0.0
        %424 = vmatpush1.msra.mxu0 %v394
        %425 = vmatprep.subr.mxu0 0.0
        %426 = vmatpush1.msra.mxu0 %v395
        %427 = vmatprep.subr.mxu0 0.0
        %428 = vmatpush1.msra.mxu0 %v396
        %429 = vmatprep.subr.mxu0 0.0
        %430 = vmatpush1.msra.mxu0 %v397
        %431 = vmatprep.subr.mxu0 0.0
        %432 = vmatpush1.msra.mxu0 %v398
        %433 = vmatprep.subr.mxu0 0.0
        %434 = vmatpush1.msra.mxu0 %v399
        %435 = vmatprep.subr.mxu0 0.0
        %436 = vmatpush1.msra.mxu0 %v400
        %437 = vmatprep.subr.mxu0 0.0
        %438 = vmatpush1.msra.mxu0 %v401
        %439 = vmatprep.subr.mxu0 0.0
        %440 = vmatpush1.msra.mxu0 %v402
        %441 = vmatprep.subr.mxu0 0.0
        %442 = vmatpush1.msra.mxu0 %v403
        %443 = vmatprep.subr.mxu0 0.0
        %444 = vmatpush1.msra.mxu0 0.0
        %445 = vmatprep.subr.mxu0 0.0
        %446 = vmatpush1.msra.mxu0 0.0
        %447 = vmatprep.subr.mxu0 0.0
        %448 = vmatpush1.msra.mxu0 0.0
        %449 = vmatprep.subr.mxu0 0.0
        %450 = vmatpush1.msra.mxu0 0.0
        %451 = vmatprep.subr.mxu0 0.0
        %452 = vmatpush1.msra.mxu0 0.0
        %453 = vmatprep.subr.mxu0 0.0
        %454 = vmatpush1.msra.mxu0 0.0
        %455 = vmatprep.subr.mxu0 0.0
        %456 = vmatpush1.msra.mxu0 0.0
        %457 = vmatprep.subr.mxu0 0.0
        %458 = vmatpush1.msra.mxu0 0.0
        %459 = vmatprep.subr.mxu0 0.0
        %460 = vmatpush1.msra.mxu0 0.0
        %461 = vmatprep.subr.mxu0 0.0
        %462 = vmatpush1.msra.mxu0 0.0
        %463 = vmatprep.subr.mxu0 0.0
        %464 = vmatpush1.msra.mxu0 0.0
        %465 = vmatprep.subr.mxu0 0.0
        %466 = vmatpush1.msra.mxu0 0.0
        %467 = vmatprep.subr.mxu0 0.0
        %468 = vmatpush1.msra.mxu0 0.0
        %469 = vmatprep.subr.mxu0 0.0
        %470 = vmatpush1.msra.mxu0 0.0
        %471 = vmatprep.subr.mxu0 0.0
        %472 = vmatpush1.msra.mxu0 0.0
        %473 = vmatprep.subr.mxu0 0.0
        %474 = vmatpush1.msra.mxu0 0.0
        %475 = vmatprep.mubr.f32.mxu0 0.0
        %476 = vmatmul.mubr.f32.gmra.mrb[0].mxu0 %v387
        %v477 = vpop.f32.mrb[0].mxu0
        %v478 = vadd.f32 %v409, %v477
        %v479 = vpop.f32.mrb[0].mxu0
        %480 = vdwg.mxu0
        %v481 = vmax.f32 %v478, 0.0
        %v482 = vld [vmem:[#allocation4] sm:$0xff]
        %v483 = vld [vmem:[#allocation4 + $0x8] sm:$0xff]
        %v484 = vld [vmem:[#allocation4 + $0x10] sm:$0xff]
        %v485 = vld [vmem:[#allocation4 + $0x18] sm:$0xff]
        %v486 = vld [vmem:[#allocation4 + $0x20] sm:$0xff]
        %v487 = vld [vmem:[#allocation4 + $0x28] sm:$0xff]
        %v488 = vld [vmem:[#allocation4 + $0x30] sm:$0xff]
        %v489 = vld [vmem:[#allocation4 + $0x38] sm:$0xff]
        %v490 = vld [vmem:[#allocation4 + $0x40] sm:$0xff]
        %v491 = vld [vmem:[#allocation4 + $0x48] sm:$0xff]
        %v492 = vld [vmem:[#allocation4 + $0x50] sm:$0xff]
        %v493 = vld [vmem:[#allocation4 + $0x58] sm:$0xff]
        %v494 = vld [vmem:[#allocation4 + $0x60] sm:$0xff]
        %v495 = vld [vmem:[#allocation4 + $0x68] sm:$0xff]
        %v496 = vld [vmem:[#allocation4 + $0x70] sm:$0xff]
        %v497 = vld [vmem:[#allocation4 + $0x78] sm:$0xff]
        %v498 = vld [vmem:[%s6] sm:$0x1]
        %v500 = vlaneseq
        %v501 = vshrl.u32 %v500, 7
        %v502 = vsub.s32 0, %v501
        %v503 = vrot.slane %v498, %v502
        %505 = vmatprep.subr.mxu0 0.0
        %506 = vmatpush1.msra.mxu0 %v482
        %507 = vmatprep.subr.mxu0 0.0
        %508 = vmatpush1.msra.mxu0 %v483
        %509 = vmatprep.subr.mxu0 0.0
        %510 = vmatpush1.msra.mxu0 %v484
        %511 = vmatprep.subr.mxu0 0.0
        %512 = vmatpush1.msra.mxu0 %v485
        %513 = vmatprep.subr.mxu0 0.0
        %514 = vmatpush1.msra.mxu0 %v486
        %515 = vmatprep.subr.mxu0 0.0
        %516 = vmatpush1.msra.mxu0 %v487
        %517 = vmatprep.subr.mxu0 0.0
        %518 = vmatpush1.msra.mxu0 %v488
        %519 = vmatprep.subr.mxu0 0.0
        %520 = vmatpush1.msra.mxu0 %v489
        %521 = vmatprep.subr.mxu0 0.0
        %522 = vmatpush1.msra.mxu0 %v490
        %523 = vmatprep.subr.mxu0 0.0
        %524 = vmatpush1.msra.mxu0 %v491
        %525 = vmatprep.subr.mxu0 0.0
        %526 = vmatpush1.msra.mxu0 %v492
        %527 = vmatprep.subr.mxu0 0.0
        %528 = vmatpush1.msra.mxu0 %v493
        %529 = vmatprep.subr.mxu0 0.0
        %530 = vmatpush1.msra.mxu0 %v494
        %531 = vmatprep.subr.mxu0 0.0
        %532 = vmatpush1.msra.mxu0 %v495
        %533 = vmatprep.subr.mxu0 0.0
        %534 = vmatpush1.msra.mxu0 %v496
        %535 = vmatprep.subr.mxu0 0.0
        %536 = vmatpush1.msra.mxu0 %v497
        %537 = vmatprep.subr.mxu0 0.0
        %538 = vmatpush1.msra.mxu0 0.0
        %539 = vmatprep.subr.mxu0 0.0
        %540 = vmatpush1.msra.mxu0 0.0
        %541 = vmatprep.subr.mxu0 0.0
        %542 = vmatpush1.msra.mxu0 0.0
        %543 = vmatprep.subr.mxu0 0.0
        %544 = vmatpush1.msra.mxu0 0.0
        %545 = vmatprep.subr.mxu0 0.0
        %546 = vmatpush1.msra.mxu0 0.0
        %547 = vmatprep.subr.mxu0 0.0
        %548 = vmatpush1.msra.mxu0 0.0
        %549 = vmatprep.subr.mxu0 0.0
        %550 = vmatpush1.msra.mxu0 0.0
        %551 = vmatprep.subr.mxu0 0.0
        %552 = vmatpush1.msra.mxu0 0.0
        %553 = vmatprep.subr.mxu0 0.0
        %554 = vmatpush1.msra.mxu0 0.0
        %555 = vmatprep.subr.mxu0 0.0
        %556 = vmatpush1.msra.mxu0 0.0
        %557 = vmatprep.subr.mxu0 0.0
        %558 = vmatpush1.msra.mxu0 0.0
        %559 = vmatprep.subr.mxu0 0.0
        %560 = vmatpush1.msra.mxu0 0.0
        %561 = vmatprep.subr.mxu0 0.0
        %562 = vmatpush1.msra.mxu0 0.0
        %563 = vmatprep.subr.mxu0 0.0
        %564 = vmatpush1.msra.mxu0 0.0
        %565 = vmatprep.subr.mxu0 0.0
        %566 = vmatpush1.msra.mxu0 0.0
        %567 = vmatprep.subr.mxu0 0.0
        %568 = vmatpush1.msra.mxu0 0.0
        %569 = vmatprep.mubr.f32.mxu0 0.0
        %570 = vmatmul.mubr.f32.gmra.mrb[0].mxu0 %v481
        %v571 = vpop.f32.mrb[0].mxu0
        %v572 = vadd.f32 %v503, %v571
        %v573 = vpop.f32.mrb[0].mxu0
        %574 = vdwg.mxu0
        %575 = vst [vmem:[%s303] sm:$0xff] %v572
        %p576 = scmp.lt.s32.totalorder %s20, 1
        %s577 = scalar_select %p576, %s20, 1
        %s578 = smul.addr %s577, 8
        %s579 = scalar_lea.vmem %s7, %s578
        // Predicated region
        $region57: #{mlp_forward.1} parent=47 // pred_check
          %p580 = pneg %p190
        $region58: #{mlp_forward.1} parent=47 // pred_check_branch
          %582 = sbr.rel (%p580) target = $region60
        $region59: #{mlp_forward.1} parent=47 // pred_region
          _
        $region60: #{mlp_forward.1} parent=47 // pred_fallthru
          _
      $region48: #{mlp_forward.1} parent=5 // pred_fallthru
        _
      %p583 = scmp.le.s32.totalorder 2, %s15
      // Predicated region
      $region61: #{mlp_forward.1} parent=5 // pred_check
        %p584 = pneg %p583
      $region62: #{mlp_forward.1} parent=5 // pred_check_branch
        %586 = sbr.rel (%p584) target = $region64
      $region63: #{mlp_forward.1} parent=5 // pred_region
        %s587 = ssub.s32 %s15, 2
        // Predicated region
        $region65: #{mlp_forward.1} parent=63 // pred_check
          %p588 = pneg %p196
        $region66: #{mlp_forward.1} parent=63 // pred_check_branch
          %590 = sbr.rel (%p588) target = $region68
        $region67: #{mlp_forward.1} parent=63 // pred_region
          %p591 = scmp.lt.s32.totalorder %s21, 1
          %s592 = scalar_select %p591, %s21, 1
          %s593 = smul.addr %s592, 8
          %s594 = scalar_lea.vmem %s7, %s593
        $region68: #{mlp_forward.1} parent=63 // pred_fallthru
          _
      $region64: #{mlp_forward.1} parent=5 // pred_fallthru
        _
    $region6: #{mlp_forward.1} parent=1 // loop_footer
      %s19 = sadd.s32 1, %s15
    $region7: #{mlp_forward.1} parent=1 // loop_footer_branch
      %14 = sbr.rel target = $region3
    $region8: #{mlp_forward.1} parent=1 // loop_exit
      _
    %595 = vsyncpa [#allocation3], 1
    %s596 = scalar_lea.sflag [#allocation3], 1
    %597 = vsyncpa %s596, 1
    %598 = vsyncpa [#allocation5], 1

</llo_original>
